<compile_context>
chip_gen: v7x
topology: tpu7x:2x2x1
jax: 0.10.0
libtpu: 0.0.40
codegen_flags: <defaults>
</compile_context>

<pallas_src>
import functools

import jax
import jax.numpy as jnp
from jax.experimental import pallas as pl
from jax.experimental.pallas import tpu as pltpu

_MIB = 1024 * 1024


def _round_up(x, m):
    return ((x + m - 1) // m) * m


def _vmem_capacity_bytes():
    """Physical VMEM of the local chip; conservative (v7x-sized) default on failure."""
    try:
        return int(pltpu.get_tpu_info().vmem_capacity_bytes)
    except Exception:
        return 64 * _MIB


def _innerprod_rows_kernel(h_ref, hp_ref, hn_ref, pa_ref, n_ref):
    """Standard path (D >= 128 or unpackable): lane-dense (1, tile_rows) output slabs."""
    h = h_ref[...]
    hp = hp_ref[...]
    hn = hn_ref[...]
    if h.dtype != jnp.float32:  # trace-time branch; accumulate in f32
        h = h.astype(jnp.float32)
        hp = hp.astype(jnp.float32)
        hn = hn.astype(jnp.float32)
    pa = jnp.sum(h * hp, axis=1)  # (tile_rows,)
    ng = jnp.sum(h * hn, axis=1)  # (tile_rows,)
    pa_ref[...] = pa[None, :].astype(pa_ref.dtype)
    n_ref[...] = ng[None, :].astype(n_ref.dtype)


def _innerprod_packed_kernel(h_ref, hp_ref, hn_ref, pa_ref, n_ref, *, pack, d_inner):
    """Narrow-D path: each VMEM row packs `pack` original rows (pack * d_inner == 128 lanes).

    Exact f32 segmented reduction: per-segment lane-slice + cross-lane sum (VPU/XLU),
    keeping results bit-comparable to a plain f32 sum (no MXU bf16 rounding).
    """
    h = h_ref[...]
    hp = hp_ref[...]
    hn = hn_ref[...]
    if h.dtype != jnp.float32:
        h = h.astype(jnp.float32)
        hp = hp.astype(jnp.float32)
        hn = hn.astype(jnp.float32)
    prod_pa = h * hp
    prod_n = h * hn
    pa_cols = []
    n_cols = []
    for j in range(pack):  # static Python loop, pack is small (2/4/8/16)
        lo = j * d_inner
        hi = lo + d_inner
        pa_cols.append(jnp.sum(prod_pa[:, lo:hi], axis=1, keepdims=True))
        n_cols.append(jnp.sum(prod_n[:, lo:hi], axis=1, keepdims=True))
    pa = pa_cols[0] if pack == 1 else jnp.concatenate(pa_cols, axis=1)  # (tile, pack)
    ng = n_cols[0] if pack == 1 else jnp.concatenate(n_cols, axis=1)
    pa_ref[...] = pa.astype(pa_ref.dtype)
    n_ref[...] = ng.astype(n_ref.dtype)


def discriminator_innerprod(H, Hp1, Hn, *, tile_rows=None, min_pallas_bytes=512 * 1024):
    """Returns (logits_pa, logits_n), each (N, 1), same dtype as H."""
    N, D = H.shape
    assert Hp1.shape == (N, D) and Hn.shape == (N, D)
    dtype = H.dtype
    itemsize = jnp.dtype(dtype).itemsize

    # ---- Generation-aware VMEM sizing -------------------------------------
    vmem_cap = _vmem_capacity_bytes()
    if vmem_cap >= 96 * _MIB:        # v5e / v6e: 128 MiB physical VMEM
        tile_budget = 48 * _MIB
        vmem_clamp = 96 * _MIB
    else:                            # v7x (64 MiB) or unknown: stay conservative
        tile_budget = 24 * _MIB
        vmem_clamp = 48 * _MIB

    # ---- Narrow-D lane packing: (N, D) -> (N/p, p*D == 128) ---------------
    pack = 1
    if D < 128 and 128 % D == 0:
        p = 128 // D
        if N % p == 0 and N >= 128 * p:
            pack = p
    rows = N // pack
    lanes = pack * D
    lane_padded = _round_up(lanes, 128)

    # Per-(packed)-row VMEM cost: 3 inputs x 2 pipeline buffers + f32 product /
    # upcast temporaries (accounts for bf16/fp8 inputs upcast to f32 in-kernel).
    per_row = 6 * lane_padded * itemsize + 3 * lane_padded * 4

    total_in_bytes = 3 * N * D * itemsize
    use_pallas = (
        total_in_bytes >= min_pallas_bytes      # tiny problem: fused XLA is as fast
        and N >= 128                            # keep blocks within simple ragged handling
        and 128 * per_row <= tile_budget        # huge D: no K-split path, use XLA
    )
    if not use_pallas:
        logits_pa = jnp.sum(H * Hp1, axis=1, keepdims=True).astype(dtype)
        logits_n = jnp.sum(H * Hn, axis=1, keepdims=True).astype(dtype)
        return logits_pa, logits_n

    # ---- Row tile: fill the VMEM budget; keep >=2 grid steps when possible
    #      so a 2-TC chip (v7x) shards rows across both TensorCores. ---------
    rows_padded = _round_up(rows, 128)
    if tile_rows is None:
        t = (tile_budget // per_row) // 128 * 128
        t = max(128, int(t))
        t = min(t, rows_padded)
        if rows_padded >= 256:
            t = min(t, _round_up((rows + 1) // 2, 128))
        tile_rows = int(t)
    tile_rows = min(max(128, (int(tile_rows) // 128) * 128), rows_padded)

    grid = (pl.cdiv(rows, tile_rows),)

    footprint = tile_rows * per_row + 4 * tile_rows * pack * itemsize
    vmem_limit = int(min(vmem_clamp, max(32 * _MIB, footprint + footprint // 4)))

    cost = pl.CostEstimate(
        flops=4 * N * D,  # 2 muls + 2 adds per element (both logits)
        transcendentals=0,
        bytes_accessed=3 * N * D * itemsize + 2 * N * itemsize,
    )

    if pack == 1:
        kernel = _innerprod_rows_kernel
        operands = (H, Hp1, Hn)
        in_spec = pl.BlockSpec((tile_rows, D), lambda i: (i, 0))
        out_spec = pl.BlockSpec((1, tile_rows), lambda i: (0, i))   # lane-dense stores
        out_shape = (jax.ShapeDtypeStruct((1, N), dtype),
                     jax.ShapeDtypeStruct((1, N), dtype))
    else:
        kernel = functools.partial(_innerprod_packed_kernel, pack=pack, d_inner=D)
        operands = (H.reshape(rows, lanes),
                    Hp1.reshape(rows, lanes),
                    Hn.reshape(rows, lanes))                         # free contiguous views
        in_spec = pl.BlockSpec((tile_rows, lanes), lambda i: (i, 0))
        out_spec = pl.BlockSpec((tile_rows, pack), lambda i: (i, 0))
        out_shape = (jax.ShapeDtypeStruct((rows, pack), dtype),
                     jax.ShapeDtypeStruct((rows, pack), dtype))

    pa_raw, n_raw = pl.pallas_call(
        kernel,
        out_shape=out_shape,
        grid_spec=pltpu.PrefetchScalarGridSpec(
            num_scalar_prefetch=0,
            grid=grid,
            in_specs=[in_spec, in_spec, in_spec],
            out_specs=[out_spec, out_spec],
        ),
        compiler_params=pltpu.CompilerParams(
            dimension_semantics=("parallel",),
            vmem_limit_bytes=vmem_limit,
        ),
        cost_estimate=cost,
    )(*operands)

    # Wrapper-side layout plumbing back to the PyTorch (N, 1) column shape.
    logits_pa = pa_raw.reshape(N, 1)
    logits_n = n_raw.reshape(N, 1)
    return logits_pa, logits_n


def _run_and_check(H, Hp1, Hn, name):
    pa, ng = discriminator_innerprod(H, Hp1, Hn)
    jax.block_until_ready((pa, ng))
    N = H.shape[0]
    ref_pa = jnp.sum(H * Hp1, axis=1, keepdims=True)
    ref_n = jnp.sum(H * Hn, axis=1, keepdims=True)
    assert pa.shape == (N, 1) and ng.shape == (N, 1), name
    assert jnp.allclose(pa, ref_pa, atol=1e-4, rtol=1e-5), name
    assert jnp.allclose(ng, ref_n, atol=1e-4, rtol=1e-5), name


if __name__ == "__main__":
    key = jax.random.PRNGKey(0)
    ks = jax.random.split(key, 9)

    # Case 1: narrow embedding dim (packed-lane Pallas path), N=1024, D=64.
    H1 = jax.random.normal(ks[0], (1024, 64), dtype=jnp.float32)
    Hp1_1 = jax.random.normal(ks[1], (1024, 64), dtype=jnp.float32)
    Hn1 = jax.random.normal(ks[2], (1024, 64), dtype=jnp.float32)
    _run_and_check(H1, Hp1_1, Hn1, "packed_d64")

    # Case 2: wide feature dim (standard lane-dense-output Pallas path), N=512, D=256.
    H2 = jax.random.normal(ks[3], (512, 256), dtype=jnp.float32)
    Hp1_2 = jax.random.normal(ks[4], (512, 256), dtype=jnp.float32)
    Hn2 = jax.random.normal(ks[5], (512, 256), dtype=jnp.float32)
    _run_and_check(H2, Hp1_2, Hn2, "rows_d256")

    # Case 3: tiny problem -> fused XLA fallback (robustness path).
    H3 = jax.random.normal(ks[6], (64, 32), dtype=jnp.float32)
    Hp1_3 = jax.random.normal(ks[7], (64, 32), dtype=jnp.float32)
    Hn3 = jax.random.normal(ks[8], (64, 32), dtype=jnp.float32)
    _run_and_check(H3, Hp1_3, Hn3, "tiny_fallback")

    print("KERNEL_OK")
</pallas_src>

<mosaic_0001>
module attributes {stable_mosaic.version = 11 : i64} {
  func.func @_innerprod_packed_kernel(%arg0: i32, %arg1: memref<256x128xf32, #tpu.memory_space<vmem>>, %arg2: memref<256x128xf32, #tpu.memory_space<vmem>>, %arg3: memref<256x128xf32, #tpu.memory_space<vmem>>, %arg4: memref<256x2xf32, #tpu.memory_space<vmem>>, %arg5: memref<256x2xf32, #tpu.memory_space<vmem>>) attributes {dimension_semantics = [#tpu.dimension_semantics<parallel>], iteration_bounds = array<i64: 2>, scalar_prefetch = 0 : i64, scratch_operands = 0 : i64, tpu.core_type = #tpu.core_type<tc>, window_params = [{transform_indices = @transform_0, window_bounds = array<i64: 256, 128>}, {transform_indices = @transform_1, window_bounds = array<i64: 256, 128>}, {transform_indices = @transform_2, window_bounds = array<i64: 256, 128>}, {transform_indices = @transform_3, window_bounds = array<i64: 256, 2>}, {transform_indices = @transform_4, window_bounds = array<i64: 256, 2>}]} {
    %c0 = arith.constant 0 : index
    %c0_0 = arith.constant 0 : index
    %0 = vector.load %arg1[%c0, %c0_0] : memref<256x128xf32, #tpu.memory_space<vmem>>, vector<256x128xf32>
    %c0_1 = arith.constant 0 : index
    %c0_2 = arith.constant 0 : index
    %1 = vector.load %arg2[%c0_1, %c0_2] : memref<256x128xf32, #tpu.memory_space<vmem>>, vector<256x128xf32>
    %c0_3 = arith.constant 0 : index
    %c0_4 = arith.constant 0 : index
    %2 = vector.load %arg3[%c0_3, %c0_4] : memref<256x128xf32, #tpu.memory_space<vmem>>, vector<256x128xf32>
    %3 = arith.mulf %0, %1 : vector<256x128xf32>
    %4 = arith.mulf %0, %2 : vector<256x128xf32>
    %5 = vector.extract_strided_slice %3 {offsets = [0, 0], sizes = [256, 64], strides = [1, 1]} : vector<256x128xf32> to vector<256x64xf32>
    %cst = arith.constant dense<0.000000e+00> : vector<256xf32>
    %6 = vector.multi_reduction <add>, %5, %cst [1] : vector<256x64xf32> to vector<256xf32>
    %7 = vector.shape_cast %6 : vector<256xf32> to vector<256x1xf32>
    %8 = vector.extract_strided_slice %4 {offsets = [0, 0], sizes = [256, 64], strides = [1, 1]} : vector<256x128xf32> to vector<256x64xf32>
    %cst_5 = arith.constant dense<0.000000e+00> : vector<256xf32>
    %9 = vector.multi_reduction <add>, %8, %cst_5 [1] : vector<256x64xf32> to vector<256xf32>
    %10 = vector.shape_cast %9 : vector<256xf32> to vector<256x1xf32>
    %11 = vector.extract_strided_slice %3 {offsets = [0, 64], sizes = [256, 64], strides = [1, 1]} : vector<256x128xf32> to vector<256x64xf32>
    %cst_6 = arith.constant dense<0.000000e+00> : vector<256xf32>
    %12 = vector.multi_reduction <add>, %11, %cst_6 [1] : vector<256x64xf32> to vector<256xf32>
    %13 = vector.shape_cast %12 : vector<256xf32> to vector<256x1xf32>
    %14 = vector.extract_strided_slice %4 {offsets = [0, 64], sizes = [256, 64], strides = [1, 1]} : vector<256x128xf32> to vector<256x64xf32>
    %cst_7 = arith.constant dense<0.000000e+00> : vector<256xf32>
    %15 = vector.multi_reduction <add>, %14, %cst_7 [1] : vector<256x64xf32> to vector<256xf32>
    %16 = vector.shape_cast %15 : vector<256xf32> to vector<256x1xf32>
    %17 = tpu.concatenate %7, %13 in 1 : vector<256x1xf32>, vector<256x1xf32> -> vector<256x2xf32>
    %18 = tpu.concatenate %10, %16 in 1 : vector<256x1xf32>, vector<256x1xf32> -> vector<256x2xf32>
    %c0_8 = arith.constant 0 : index
    %c0_9 = arith.constant 0 : index
    %19 = vector.load %arg4[%c0_8, %c0_9] : memref<256x2xf32, #tpu.memory_space<vmem>>, vector<256x2xf32>
    tpu.vector_store %arg4[%c0_8, %c0_9], %17 {strides = array<i32>} : memref<256x2xf32, #tpu.memory_space<vmem>>, vector<256x2xf32>,
    %c0_10 = arith.constant 0 : index
    %c0_11 = arith.constant 0 : index
    %20 = vector.load %arg5[%c0_10, %c0_11] : memref<256x2xf32, #tpu.memory_space<vmem>>, vector<256x2xf32>
    tpu.vector_store %arg5[%c0_10, %c0_11], %18 {strides = array<i32>} : memref<256x2xf32, #tpu.memory_space<vmem>>, vector<256x2xf32>,
    return
  }
  func.func @transform_0(%arg0: i32) -> (i32, i32) {
    %c0_i32 = arith.constant 0 : i32
    %c0_i32_0 = arith.constant 0 : i32
    return %arg0, %c0_i32 : i32, i32
  }
  func.func @transform_1(%arg0: i32) -> (i32, i32) {
    %c0_i32 = arith.constant 0 : i32
    %c0_i32_0 = arith.constant 0 : i32
    return %arg0, %c0_i32 : i32, i32
  }
  func.func @transform_2(%arg0: i32) -> (i32, i32) {
    %c0_i32 = arith.constant 0 : i32
    %c0_i32_0 = arith.constant 0 : i32
    return %arg0, %c0_i32 : i32, i32
  }
  func.func @transform_3(%arg0: i32) -> (i32, i32) {
    %c0_i32 = arith.constant 0 : i32
    %c0_i32_0 = arith.constant 0 : i32
    return %arg0, %c0_i32 : i32, i32
  }
  func.func @transform_4(%arg0: i32) -> (i32, i32) {
    %c0_i32 = arith.constant 0 : i32
    %c0_i32_0 = arith.constant 0 : i32
    return %arg0, %c0_i32 : i32, i32
  }
}

</mosaic_0001>

<llo_original>
// kernel: tpu_custom_call.1
$region0: #{tpu_custom_call.1}
  #allocation0 [shape = 'u32[]', space=smem, size = 0x4, offset = 0x4, fixed_abs, tag = 'smem constant byte address 0x4 - core index']
  #allocation1 [shape = 'u32[144,128]{1,0:T(1,128)}', space=vmem, size = 0x12000, scoped, tag = 'internal scratch']
  %s0 = inlined_call_operand.hbm [shape: f32[512,128], index: 0, kind: input, shape index: {}]
  %s1 = inlined_call_operand.hbm [shape: f32[512,128], index: 1, kind: input, shape index: {}]
  %s2 = inlined_call_operand.hbm [shape: f32[512,128], index: 2, kind: input, shape index: {}]
  %s3 = inlined_call_operand.vmem [shape: f32[512,2], index: 3, kind: output, shape index: {0}]
  %s4 = inlined_call_operand.vmem [shape: f32[512,2], index: 4, kind: output, shape index: {1}]
  %5 = xla_tuple %s3, %s4
  %s6 = sld [smem:[#allocation0]]
  $region65: #{tpu_custom_call.1} parent=0
    _
  %s8 = ssub.s32 1, %s6
  %s9 = scalar_select 0, %s8, %s6
  $region1: #{tpu_custom_call.1} parent=0
    #allocation2 [shape = 'u8[262144]{0}', space=vmem, size = 0x40000, scoped, tag = 'input window, operand 0']
    #allocation3 [shape = 's32[2]{0}', space=sflag, size = 0x8, scoped, tag = 'scoped memory for tpu_custom_call.1']
    #allocation4 [shape = 'u8[262144]{0}', space=vmem, size = 0x40000, scoped, tag = 'input window, operand 1']
    #allocation5 [shape = 's32[2]{0}', space=sflag, size = 0x8, scoped, tag = 'scoped memory for tpu_custom_call.1']
    #allocation6 [shape = 'u8[262144]{0}', space=vmem, size = 0x40000, scoped, tag = 'input window, operand 2']
    %10 = vsyncpa [#allocation3], 0
    %s11 = scalar_lea.sflag [#allocation3], 1
    %12 = vsyncpa %s11, 0
    %13 = vsyncpa [#allocation5], 0
    %s14 = scalar_lea.sflag [#allocation5], 1
    %15 = vsyncpa %s14, 0
    loop: start=0, step=1, limit=4
    $region2: #{tpu_custom_call.1} parent=1 // loop_pre_header
      _
    $region3: #{tpu_custom_call.1} parent=1 // loop_header
      %s17 = sphi 0, %s21
      %p18 = scmp.ge.s32.totalorder %s17, 4
      %s27 = sphi 0, %s29
      %s30 = sphi 0, %s27
      %s31 = sphi 0, %s30
      %s47 = sphi 0, %s31
      %s53 = sphi 0, %s55
      %s56 = sphi 0, %s53
      %s57 = sphi 0, %s56
      %s73 = sphi 0, %s57
      %s79 = sphi 0, %s81
      %s82 = sphi 0, %s79
      %s83 = sphi 0, %s82
      %s99 = sphi 0, %s83
      %s105 = sphi 0, %s107
      %s108 = sphi 0, %s105
      %s109 = sphi 0, %s108
      %s125 = sphi 0, %s109
      %s131 = sphi 0, %s133
      %s134 = sphi 0, %s131
      %s135 = sphi 0, %s134
      %s151 = sphi 0, %s135
    $region4: #{tpu_custom_call.1} parent=1 // loop_header_branch
      %20 = sbr.rel (%p18) target = $region8
    $region5: #{tpu_custom_call.1} parent=1 // loop_body
      %s22 = ssub.s32 %s17, 1
      %s23 = ssub.s32 %s17, 2
      %s24 = sadd.s32 %s17, 1
      %s25 = ssub.s32 %s17, %s24
      %p26 = scmp.eq.s32.totalorder %s25, 0
      %s28 = sadd.s32 %s27, 1
      %s29 = scalar_select %p26, %s27, %s28
      %p32 = pneg %p26
      %p33 = scmp.eq.s32.totalorder %s17, 1
      %p34 = por %p32, %p33
      %p35 = scmp.ne.s32.totalorder %s27, %s30
      %p36 = scmp.eq.s32.totalorder %s17, 0
      %p37 = por %p35, %p36
      %p38 = scmp.ne.s32.totalorder %s27, %s30
      %p39 = scmp.eq.s32.totalorder %s22, 1
      %p40 = por %p38, %p39
      %p41 = scmp.ne.s32.totalorder %s30, %s31
      %p42 = scmp.eq.s32.totalorder %s22, 0
      %p43 = por %p41, %p42
      %p44 = scmp.ne.s32.totalorder %s30, %s31
      %p45 = scmp.eq.s32.totalorder %s23, 1
      %p46 = por %p44, %p45
      %p48 = scmp.ne.s32.totalorder %s31, %s47
      %p49 = scmp.eq.s32.totalorder %s23, 0
      %p50 = por %p48, %p49
      %s51 = ssub.s32 %s17, %s24
      %p52 = scmp.eq.s32.totalorder %s51, 0
      %s54 = sadd.s32 %s53, 1
      %s55 = scalar_select %p52, %s53, %s54
      %p58 = pneg %p52
      %p59 = scmp.eq.s32.totalorder %s17, 1
      %p60 = por %p58, %p59
      %p61 = scmp.ne.s32.totalorder %s53, %s56
      %p62 = scmp.eq.s32.totalorder %s17, 0
      %p63 = por %p61, %p62
      %p64 = scmp.ne.s32.totalorder %s53, %s56
      %p65 = scmp.eq.s32.totalorder %s22, 1
      %p66 = por %p64, %p65
      %p67 = scmp.ne.s32.totalorder %s56, %s57
      %p68 = scmp.eq.s32.totalorder %s22, 0
      %p69 = por %p67, %p68
      %p70 = scmp.ne.s32.totalorder %s56, %s57
      %p71 = scmp.eq.s32.totalorder %s23, 1
      %p72 = por %p70, %p71
      %p74 = scmp.ne.s32.totalorder %s57, %s73
      %p75 = scmp.eq.s32.totalorder %s23, 0
      %p76 = por %p74, %p75
      %s77 = ssub.s32 %s17, %s24
      %p78 = scmp.eq.s32.totalorder %s77, 0
      %s80 = sadd.s32 %s79, 1
      %s81 = scalar_select %p78, %s79, %s80
      %p84 = pneg %p78
      %p85 = scmp.eq.s32.totalorder %s17, 1
      %p86 = por %p84, %p85
      %p87 = scmp.ne.s32.totalorder %s79, %s82
      %p88 = scmp.eq.s32.totalorder %s17, 0
      %p89 = por %p87, %p88
      %p90 = scmp.ne.s32.totalorder %s79, %s82
      %p91 = scmp.eq.s32.totalorder %s22, 1
      %p92 = por %p90, %p91
      %p93 = scmp.ne.s32.totalorder %s82, %s83
      %p94 = scmp.eq.s32.totalorder %s22, 0
      %p95 = por %p93, %p94
      %p96 = scmp.ne.s32.totalorder %s82, %s83
      %p97 = scmp.eq.s32.totalorder %s23, 1
      %p98 = por %p96, %p97
      %p100 = scmp.ne.s32.totalorder %s83, %s99
      %p101 = scmp.eq.s32.totalorder %s23, 0
      %p102 = por %p100, %p101
      %s103 = ssub.s32 %s17, %s24
      %p104 = scmp.eq.s32.totalorder %s103, 0
      %s106 = sadd.s32 %s105, 1
      %s107 = scalar_select %p104, %s105, %s106
      %p110 = pneg %p104
      %p111 = scmp.eq.s32.totalorder %s17, 1
      %p112 = por %p110, %p111
      %p113 = scmp.ne.s32.totalorder %s105, %s108
      %p114 = scmp.eq.s32.totalorder %s17, 0
      %p115 = por %p113, %p114
      %p116 = scmp.ne.s32.totalorder %s105, %s108
      %p117 = scmp.eq.s32.totalorder %s22, 1
      %p118 = por %p116, %p117
      %p119 = scmp.ne.s32.totalorder %s108, %s109
      %p120 = scmp.eq.s32.totalorder %s22, 0
      %p121 = por %p119, %p120
      %p122 = scmp.ne.s32.totalorder %s108, %s109
      %p123 = scmp.eq.s32.totalorder %s23, 1
      %p124 = por %p122, %p123
      %p126 = scmp.ne.s32.totalorder %s109, %s125
      %p127 = scmp.eq.s32.totalorder %s23, 0
      %p128 = por %p126, %p127
      %s129 = ssub.s32 %s17, %s24
      %p130 = scmp.eq.s32.totalorder %s129, 0
      %s132 = sadd.s32 %s131, 1
      %s133 = scalar_select %p130, %s131, %s132
      %p136 = pneg %p130
      %p137 = scmp.eq.s32.totalorder %s17, 1
      %p138 = por %p136, %p137
      %p139 = scmp.ne.s32.totalorder %s131, %s134
      %p140 = scmp.eq.s32.totalorder %s17, 0
      %p141 = por %p139, %p140
      %p142 = scmp.ne.s32.totalorder %s131, %s134
      %p143 = scmp.eq.s32.totalorder %s22, 1
      %p144 = por %p142, %p143
      %p145 = scmp.ne.s32.totalorder %s134, %s135
      %p146 = scmp.eq.s32.totalorder %s22, 0
      %p147 = por %p145, %p146
      %p148 = scmp.ne.s32.totalorder %s134, %s135
      %p149 = scmp.eq.s32.totalorder %s23, 1
      %p150 = por %p148, %p149
      %p152 = scmp.ne.s32.totalorder %s135, %s151
      %p153 = scmp.eq.s32.totalorder %s23, 0
      %p154 = por %p152, %p153
      %p155 = scmp.le.s32.totalorder 1, %s17
      %p156 = scmp.lt.s32.totalorder %s17, 3
      %p157 = pnand %p155, %p156
      %p158 = pneg %p157
      // Predicated region
      $region9: #{tpu_custom_call.1} parent=5 // pred_check
        _
      $region10: #{tpu_custom_call.1} parent=5 // pred_check_branch
        %160 = sbr.rel (%p157) target = $region12
      $region11: #{tpu_custom_call.1} parent=5 // pred_region
        %s161 = ssub.s32 %s17, 1
      $region12: #{tpu_custom_call.1} parent=5 // pred_fallthru
        _
      %p162 = scmp.lt.s32.totalorder %s17, 2
      // Predicated region
      $region13: #{tpu_custom_call.1} parent=5 // pred_check
        %p163 = pneg %p162
      $region14: #{tpu_custom_call.1} parent=5 // pred_check_branch
        %165 = sbr.rel (%p163) target = $region16
      $region15: #{tpu_custom_call.1} parent=5 // pred_region
        // Predicated region
        $region17: #{tpu_custom_call.1} parent=15 // pred_check
          %p166 = pneg %p37
        $region18: #{tpu_custom_call.1} parent=15 // pred_check_branch
          %168 = sbr.rel (%p166) target = $region20
        $region19: #{tpu_custom_call.1} parent=15 // pred_region
          %s169 = sand.u32 %s27, 1
          %s170 = scalar_lea.sflag [#allocation3], %s169
          %s171 = sand.u32 %s27, 1
          %s172 = smul.addr %s171, 256
          %s173 = scalar_lea.vmem [#allocation2], %s172
          %s174 = smul.u32 32, %s17
          %s176 = ssub.s32 4096, 4096
          %177 = vsyncadd %s170, %s176
          %s178 = smul.addr %s174, 128
          %s179 = scalar_lea.hbm %s0, %s178
          %s180 = sshll.u32 %s173, 4
          %s181 = int_to_ptr.vmem [resolvable:$true] %s180
          %186 = dma.hbm_to_vmem [thread:$0]  %s179, 4096, %s181, %s170, 128, 128, 8
        $region20: #{tpu_custom_call.1} parent=15 // pred_fallthru
          _
        // Predicated region
        $region21: #{tpu_custom_call.1} parent=15 // pred_check
          %p187 = pneg %p63
        $region22: #{tpu_custom_call.1} parent=15 // pred_check_branch
          %189 = sbr.rel (%p187) target = $region24
        $region23: #{tpu_custom_call.1} parent=15 // pred_region
          %s190 = sand.u32 %s17, 1
          %s191 = scalar_lea.sflag [#allocation5], %s190
          %s192 = sand.u32 %s53, 1
          %s193 = smul.addr %s192, 256
          %s194 = scalar_lea.vmem [#allocation4], %s193
          %s195 = smul.u32 32, %s17
          %s197 = ssub.s32 4096, 4096
          %198 = vsyncadd %s191, %s197
          %s199 = smul.addr %s195, 128
          %s200 = scalar_lea.hbm %s1, %s199
          %s201 = sshll.u32 %s194, 4
          %s202 = int_to_ptr.vmem [resolvable:$true] %s201
          %207 = dma.hbm_to_vmem [thread:$0]  %s200, 4096, %s202, %s191, 128, 128, 8
        $region24: #{tpu_custom_call.1} parent=15 // pred_fallthru
          _
        // Predicated region
        $region25: #{tpu_custom_call.1} parent=15 // pred_check
          %p208 = pneg %p89
        $region26: #{tpu_custom_call.1} parent=15 // pred_check_branch
          %210 = sbr.rel (%p208) target = $region28
        $region27: #{tpu_custom_call.1} parent=15 // pred_region
          %s211 = sand.u32 %s17, 1
          %s212 = scalar_lea.sflag [#allocation5], %s211
          %s213 = sand.u32 %s79, 1
          %s214 = smul.addr %s213, 256
          %s215 = scalar_lea.vmem [#allocation6], %s214
          %s216 = smul.u32 32, %s17
          %s218 = ssub.s32 4096, 4096
          %219 = vsyncadd %s212, %s218
          %s220 = smul.addr %s216, 128
          %s221 = scalar_lea.hbm %s2, %s220
          %s222 = sshll.u32 %s215, 4
          %s223 = int_to_ptr.vmem [resolvable:$true] %s222
          %228 = dma.hbm_to_vmem [thread:$0]  %s221, 4096, %s223, %s212, 128, 128, 8
        $region28: #{tpu_custom_call.1} parent=15 // pred_fallthru
          _
      $region16: #{tpu_custom_call.1} parent=5 // pred_fallthru
        _
      %p229 = scmp.le.s32.totalorder 1, %s17
      %p230 = scmp.lt.s32.totalorder %s17, 3
      %p231 = pnand %p229, %p230
      %p232 = pneg %p231
      // Predicated region
      $region29: #{tpu_custom_call.1} parent=5 // pred_check
        _
      $region30: #{tpu_custom_call.1} parent=5 // pred_check_branch
        %234 = sbr.rel (%p231) target = $region32
      $region31: #{tpu_custom_call.1} parent=5 // pred_region
        %s235 = ssub.s32 %s17, 1
        %s236 = sand.u32 %s30, 1
        %s237 = scalar_lea.sflag [#allocation3], %s236
        %s238 = sand.u32 %s30, 1
        %s239 = smul.addr %s238, 256
        %s240 = scalar_lea.vmem [#allocation2], %s239
        // Predicated region
        $region33: #{tpu_custom_call.1} parent=31 // pred_check
          %p241 = pneg %p43
        $region34: #{tpu_custom_call.1} parent=31 // pred_check_branch
          %243 = sbr.rel (%p241) target = $region36
        $region35: #{tpu_custom_call.1} parent=31 // pred_region
          %244 = dma.done %s237, 4096
        $region36: #{tpu_custom_call.1} parent=31 // pred_fallthru
          _
        %s245 = sand.u32 %s22, 1
        %s246 = scalar_lea.sflag [#allocation5], %s245
        %s247 = sand.u32 %s56, 1
        %s248 = smul.addr %s247, 256
        %s249 = scalar_lea.vmem [#allocation4], %s248
        // Predicated region
        $region37: #{tpu_custom_call.1} parent=31 // pred_check
          %p250 = pneg %p69
        $region38: #{tpu_custom_call.1} parent=31 // pred_check_branch
          %252 = sbr.rel (%p250) target = $region40
        $region39: #{tpu_custom_call.1} parent=31 // pred_region
          %253 = dma.done %s246, 4096
        $region40: #{tpu_custom_call.1} parent=31 // pred_fallthru
          _
        %s254 = sand.u32 %s22, 1
        %s255 = scalar_lea.sflag [#allocation5], %s254
        %s256 = sand.u32 %s82, 1
        %s257 = smul.addr %s256, 256
        %s258 = scalar_lea.vmem [#allocation6], %s257
        // Predicated region
        $region41: #{tpu_custom_call.1} parent=31 // pred_check
          %p259 = pneg %p95
        $region42: #{tpu_custom_call.1} parent=31 // pred_check_branch
          %261 = sbr.rel (%p259) target = $region44
        $region43: #{tpu_custom_call.1} parent=31 // pred_region
          %262 = dma.done %s255, 4096
        $region44: #{tpu_custom_call.1} parent=31 // pred_fallthru
          _
        %s263 = sand.u32 %s30, 1
        %s264 = scalar_lea.sflag [#allocation3], %s263
        %s265 = sand.u32 %s30, 1
        %s266 = smul.addr %s265, 256
        %s267 = scalar_lea.vmem [#allocation2], %s266
        %p268 = pneg %p43
        %p269 = pneg %p40
        %s270 = sand.u32 %s22, 1
        %s271 = scalar_lea.sflag [#allocation5], %s270
        %s272 = sand.u32 %s56, 1
        %s273 = smul.addr %s272, 256
        %s274 = scalar_lea.vmem [#allocation4], %s273
        %p275 = pneg %p69
        %p276 = pneg %p66
        %s277 = sand.u32 %s22, 1
        %s278 = scalar_lea.sflag [#allocation5], %s277
        %s279 = sand.u32 %s82, 1
        %s280 = smul.addr %s279, 256
        %s281 = scalar_lea.vmem [#allocation6], %s280
        %p282 = pneg %p95
        %p283 = pneg %p92
        %p284 = pneg %p121
        %p285 = pneg %p118
        %s286 = smul.u32 32, %s22
        %p287 = scmp.lt.s32.totalorder %s286, 63
        %s288 = scalar_select %p287, %s286, 63
        %s289 = smul.addr %s288, 8
        %s290 = scalar_lea.vmem %s3, %s289
        %p291 = pneg %p147
        %p292 = pneg %p144
        %s293 = smul.u32 32, %s22
        %p294 = scmp.lt.s32.totalorder %s293, 63
        %s295 = scalar_select %p294, %s293, 63
        %s296 = smul.addr %s295, 8
        %s297 = scalar_lea.vmem %s4, %s296
        %s298 = smul.u32 32, %s22
        %s299 = smul.u32 32, %s22
        %s300 = smul.u32 32, %s22
        %s301 = smul.u32 32, %s22
        %p302 = scmp.lt.s32.totalorder %s301, 63
        %s303 = scalar_select %p302, %s301, 63
        %s304 = smul.addr %s303, 8
        %s305 = scalar_lea.vmem %s3, %s304
        %s306 = smul.u32 32, %s22
        %s307 = smul.u32 32, %s22
        %p308 = scmp.lt.s32.totalorder %s307, 63
        %s309 = scalar_select %p308, %s307, 63
        %s310 = smul.addr %s309, 8
        %s311 = scalar_lea.vmem %s4, %s310
        %s312 = smul.u32 32, %s22
        %v313 = vld [vmem:[%s240] sm:$0xff]
        %v314 = vld [vmem:[%s240 + $0x8] sm:$0xff]
        %v315 = vld [vmem:[%s240 + $0x10] sm:$0xff]
        %v316 = vld [vmem:[%s240 + $0x18] sm:$0xff]
        %v317 = vld [vmem:[%s240 + $0x20] sm:$0xff]
        %v318 = vld [vmem:[%s240 + $0x28] sm:$0xff]
        %v319 = vld [vmem:[%s240 + $0x30] sm:$0xff]
        %v320 = vld [vmem:[%s240 + $0x38] sm:$0xff]
        %v321 = vld [vmem:[%s240 + $0x40] sm:$0xff]
        %v322 = vld [vmem:[%s240 + $0x48] sm:$0xff]
        %v323 = vld [vmem:[%s240 + $0x50] sm:$0xff]
        %v324 = vld [vmem:[%s240 + $0x58] sm:$0xff]
        %v325 = vld [vmem:[%s240 + $0x60] sm:$0xff]
        %v326 = vld [vmem:[%s240 + $0x68] sm:$0xff]
        %v327 = vld [vmem:[%s240 + $0x70] sm:$0xff]
        %v328 = vld [vmem:[%s240 + $0x78] sm:$0xff]
        %v329 = vld [vmem:[%s240 + $0x80] sm:$0xff]
        %v330 = vld [vmem:[%s240 + $0x88] sm:$0xff]
        %v331 = vld [vmem:[%s240 + $0x90] sm:$0xff]
        %v332 = vld [vmem:[%s240 + $0x98] sm:$0xff]
        %v333 = vld [vmem:[%s240 + $0xa0] sm:$0xff]
        %v334 = vld [vmem:[%s240 + $0xa8] sm:$0xff]
        %v335 = vld [vmem:[%s240 + $0xb0] sm:$0xff]
        %v336 = vld [vmem:[%s240 + $0xb8] sm:$0xff]
        %v337 = vld [vmem:[%s240 + $0xc0] sm:$0xff]
        %v338 = vld [vmem:[%s240 + $0xc8] sm:$0xff]
        %v339 = vld [vmem:[%s240 + $0xd0] sm:$0xff]
        %v340 = vld [vmem:[%s240 + $0xd8] sm:$0xff]
        %v341 = vld [vmem:[%s240 + $0xe0] sm:$0xff]
        %v342 = vld [vmem:[%s240 + $0xe8] sm:$0xff]
        %v343 = vld [vmem:[%s240 + $0xf0] sm:$0xff]
        %v344 = vld [vmem:[%s240 + $0xf8] sm:$0xff]
        %v345 = vld [vmem:[%s249] sm:$0xff]
        %v346 = vld [vmem:[%s249 + $0x8] sm:$0xff]
        %v347 = vld [vmem:[%s249 + $0x10] sm:$0xff]
        %v348 = vld [vmem:[%s249 + $0x18] sm:$0xff]
        %v349 = vld [vmem:[%s249 + $0x20] sm:$0xff]
        %v350 = vld [vmem:[%s249 + $0x28] sm:$0xff]
        %v351 = vld [vmem:[%s249 + $0x30] sm:$0xff]
        %v352 = vld [vmem:[%s249 + $0x38] sm:$0xff]
        %v353 = vld [vmem:[%s249 + $0x40] sm:$0xff]
        %v354 = vld [vmem:[%s249 + $0x48] sm:$0xff]
        %v355 = vld [vmem:[%s249 + $0x50] sm:$0xff]
        %v356 = vld [vmem:[%s249 + $0x58] sm:$0xff]
        %v357 = vld [vmem:[%s249 + $0x60] sm:$0xff]
        %v358 = vld [vmem:[%s249 + $0x68] sm:$0xff]
        %v359 = vld [vmem:[%s249 + $0x70] sm:$0xff]
        %v360 = vld [vmem:[%s249 + $0x78] sm:$0xff]
        %v361 = vld [vmem:[%s249 + $0x80] sm:$0xff]
        %v362 = vld [vmem:[%s249 + $0x88] sm:$0xff]
        %v363 = vld [vmem:[%s249 + $0x90] sm:$0xff]
        %v364 = vld [vmem:[%s249 + $0x98] sm:$0xff]
        %v365 = vld [vmem:[%s249 + $0xa0] sm:$0xff]
        %v366 = vld [vmem:[%s249 + $0xa8] sm:$0xff]
        %v367 = vld [vmem:[%s249 + $0xb0] sm:$0xff]
        %v368 = vld [vmem:[%s249 + $0xb8] sm:$0xff]
        %v369 = vld [vmem:[%s249 + $0xc0] sm:$0xff]
        %v370 = vld [vmem:[%s249 + $0xc8] sm:$0xff]
        %v371 = vld [vmem:[%s249 + $0xd0] sm:$0xff]
        %v372 = vld [vmem:[%s249 + $0xd8] sm:$0xff]
        %v373 = vld [vmem:[%s249 + $0xe0] sm:$0xff]
        %v374 = vld [vmem:[%s249 + $0xe8] sm:$0xff]
        %v375 = vld [vmem:[%s249 + $0xf0] sm:$0xff]
        %v376 = vld [vmem:[%s249 + $0xf8] sm:$0xff]
        %v377 = vld [vmem:[%s258] sm:$0xff]
        %v378 = vld [vmem:[%s258 + $0x8] sm:$0xff]
        %v379 = vld [vmem:[%s258 + $0x10] sm:$0xff]
        %v380 = vld [vmem:[%s258 + $0x18] sm:$0xff]
        %v381 = vld [vmem:[%s258 + $0x20] sm:$0xff]
        %v382 = vld [vmem:[%s258 + $0x28] sm:$0xff]
        %v383 = vld [vmem:[%s258 + $0x30] sm:$0xff]
        %v384 = vld [vmem:[%s258 + $0x38] sm:$0xff]
        %v385 = vld [vmem:[%s258 + $0x40] sm:$0xff]
        %v386 = vld [vmem:[%s258 + $0x48] sm:$0xff]
        %v387 = vld [vmem:[%s258 + $0x50] sm:$0xff]
        %v388 = vld [vmem:[%s258 + $0x58] sm:$0xff]
        %v389 = vld [vmem:[%s258 + $0x60] sm:$0xff]
        %v390 = vld [vmem:[%s258 + $0x68] sm:$0xff]
        %v391 = vld [vmem:[%s258 + $0x70] sm:$0xff]
        %v392 = vld [vmem:[%s258 + $0x78] sm:$0xff]
        %v393 = vld [vmem:[%s258 + $0x80] sm:$0xff]
        %v394 = vld [vmem:[%s258 + $0x88] sm:$0xff]
        %v395 = vld [vmem:[%s258 + $0x90] sm:$0xff]
        %v396 = vld [vmem:[%s258 + $0x98] sm:$0xff]
        %v397 = vld [vmem:[%s258 + $0xa0] sm:$0xff]
        %v398 = vld [vmem:[%s258 + $0xa8] sm:$0xff]
        %v399 = vld [vmem:[%s258 + $0xb0] sm:$0xff]
        %v400 = vld [vmem:[%s258 + $0xb8] sm:$0xff]
        %v401 = vld [vmem:[%s258 + $0xc0] sm:$0xff]
        %v402 = vld [vmem:[%s258 + $0xc8] sm:$0xff]
        %v403 = vld [vmem:[%s258 + $0xd0] sm:$0xff]
        %v404 = vld [vmem:[%s258 + $0xd8] sm:$0xff]
        %v405 = vld [vmem:[%s258 + $0xe0] sm:$0xff]
        %v406 = vld [vmem:[%s258 + $0xe8] sm:$0xff]
        %v407 = vld [vmem:[%s258 + $0xf0] sm:$0xff]
        %v408 = vld [vmem:[%s258 + $0xf8] sm:$0xff]
        %v409 = vmul.f32 %v313, %v345
        %v410 = vmul.f32 %v314, %v346
        %v411 = vmul.f32 %v315, %v347
        %v412 = vmul.f32 %v316, %v348
        %v413 = vmul.f32 %v317, %v349
        %v414 = vmul.f32 %v318, %v350
        %v415 = vmul.f32 %v319, %v351
        %v416 = vmul.f32 %v320, %v352
        %v417 = vmul.f32 %v321, %v353
        %v418 = vmul.f32 %v322, %v354
        %v419 = vmul.f32 %v323, %v355
        %v420 = vmul.f32 %v324, %v356
        %v421 = vmul.f32 %v325, %v357
        %v422 = vmul.f32 %v326, %v358
        %v423 = vmul.f32 %v327, %v359
        %v424 = vmul.f32 %v328, %v360
        %v425 = vmul.f32 %v329, %v361
        %v426 = vmul.f32 %v330, %v362
        %v427 = vmul.f32 %v331, %v363
        %v428 = vmul.f32 %v332, %v364
        %v429 = vmul.f32 %v333, %v365
        %v430 = vmul.f32 %v334, %v366
        %v431 = vmul.f32 %v335, %v367
        %v432 = vmul.f32 %v336, %v368
        %v433 = vmul.f32 %v337, %v369
        %v434 = vmul.f32 %v338, %v370
        %v435 = vmul.f32 %v339, %v371
        %v436 = vmul.f32 %v340, %v372
        %v437 = vmul.f32 %v341, %v373
        %v438 = vmul.f32 %v342, %v374
        %v439 = vmul.f32 %v343, %v375
        %v440 = vmul.f32 %v344, %v376
        %v441 = vmul.f32 %v313, %v377
        %v442 = vmul.f32 %v314, %v378
        %v443 = vmul.f32 %v315, %v379
        %v444 = vmul.f32 %v316, %v380
        %v445 = vmul.f32 %v317, %v381
        %v446 = vmul.f32 %v318, %v382
        %v447 = vmul.f32 %v319, %v383
        %v448 = vmul.f32 %v320, %v384
        %v449 = vmul.f32 %v321, %v385
        %v450 = vmul.f32 %v322, %v386
        %v451 = vmul.f32 %v323, %v387
        %v452 = vmul.f32 %v324, %v388
        %v453 = vmul.f32 %v325, %v389
        %v454 = vmul.f32 %v326, %v390
        %v455 = vmul.f32 %v327, %v391
        %v456 = vmul.f32 %v328, %v392
        %v457 = vmul.f32 %v329, %v393
        %v458 = vmul.f32 %v330, %v394
        %v459 = vmul.f32 %v331, %v395
        %v460 = vmul.f32 %v332, %v396
        %v461 = vmul.f32 %v333, %v397
        %v462 = vmul.f32 %v334, %v398
        %v463 = vmul.f32 %v335, %v399
        %v464 = vmul.f32 %v336, %v400
        %v465 = vmul.f32 %v337, %v401
        %v466 = vmul.f32 %v338, %v402
        %v467 = vmul.f32 %v339, %v403
        %v468 = vmul.f32 %v340, %v404
        %v469 = vmul.f32 %v341, %v405
        %v470 = vmul.f32 %v342, %v406
        %v471 = vmul.f32 %v343, %v407
        %v472 = vmul.f32 %v344, %v408
        %vm473 = vcmask 523264
        %v474 = vsel %vm473, %v409, 0.0
        %475 = vadd.xlane.f32.xlu0 %v474
        %v476 = vpop.xlane.xlu0 %475
        %v477 = vsel %vm473, %v410, 0.0
        %478 = vadd.xlane.f32.xlu0 %v477
        %v479 = vpop.xlane.xlu0 %478
        %v480 = vsel %vm473, %v411, 0.0
        %481 = vadd.xlane.f32.xlu0 %v480
        %v482 = vpop.xlane.xlu0 %481
        %v483 = vsel %vm473, %v412, 0.0
        %484 = vadd.xlane.f32.xlu0 %v483
        %v485 = vpop.xlane.xlu0 %484
        %v486 = vsel %vm473, %v413, 0.0
        %487 = vadd.xlane.f32.xlu0 %v486
        %v488 = vpop.xlane.xlu0 %487
        %v489 = vsel %vm473, %v414, 0.0
        %490 = vadd.xlane.f32.xlu0 %v489
        %v491 = vpop.xlane.xlu0 %490
        %v492 = vsel %vm473, %v415, 0.0
        %493 = vadd.xlane.f32.xlu0 %v492
        %v494 = vpop.xlane.xlu0 %493
        %v495 = vsel %vm473, %v416, 0.0
        %496 = vadd.xlane.f32.xlu0 %v495
        %v497 = vpop.xlane.xlu0 %496
        %v498 = vsel %vm473, %v417, 0.0
        %499 = vadd.xlane.f32.xlu0 %v498
        %v500 = vpop.xlane.xlu0 %499
        %v501 = vsel %vm473, %v418, 0.0
        %502 = vadd.xlane.f32.xlu0 %v501
        %v503 = vpop.xlane.xlu0 %502
        %v504 = vsel %vm473, %v419, 0.0
        %505 = vadd.xlane.f32.xlu0 %v504
        %v506 = vpop.xlane.xlu0 %505
        %v507 = vsel %vm473, %v420, 0.0
        %508 = vadd.xlane.f32.xlu0 %v507
        %v509 = vpop.xlane.xlu0 %508
        %v510 = vsel %vm473, %v421, 0.0
        %511 = vadd.xlane.f32.xlu0 %v510
        %v512 = vpop.xlane.xlu0 %511
        %v513 = vsel %vm473, %v422, 0.0
        %514 = vadd.xlane.f32.xlu0 %v513
        %v515 = vpop.xlane.xlu0 %514
        %v516 = vsel %vm473, %v423, 0.0
        %517 = vadd.xlane.f32.xlu0 %v516
        %v518 = vpop.xlane.xlu0 %517
        %v519 = vsel %vm473, %v424, 0.0
        %520 = vadd.xlane.f32.xlu0 %v519
        %v521 = vpop.xlane.xlu0 %520
        %v522 = vsel %vm473, %v425, 0.0
        %523 = vadd.xlane.f32.xlu0 %v522
        %v524 = vpop.xlane.xlu0 %523
        %v525 = vsel %vm473, %v426, 0.0
        %526 = vadd.xlane.f32.xlu0 %v525
        %v527 = vpop.xlane.xlu0 %526
        %v528 = vsel %vm473, %v427, 0.0
        %529 = vadd.xlane.f32.xlu0 %v528
        %v530 = vpop.xlane.xlu0 %529
        %v531 = vsel %vm473, %v428, 0.0
        %532 = vadd.xlane.f32.xlu0 %v531
        %v533 = vpop.xlane.xlu0 %532
        %v534 = vsel %vm473, %v429, 0.0
        %535 = vadd.xlane.f32.xlu0 %v534
        %v536 = vpop.xlane.xlu0 %535
        %v537 = vsel %vm473, %v430, 0.0
        %538 = vadd.xlane.f32.xlu0 %v537
        %v539 = vpop.xlane.xlu0 %538
        %v540 = vsel %vm473, %v431, 0.0
        %541 = vadd.xlane.f32.xlu0 %v540
        %v542 = vpop.xlane.xlu0 %541
        %v543 = vsel %vm473, %v432, 0.0
        %544 = vadd.xlane.f32.xlu0 %v543
        %v545 = vpop.xlane.xlu0 %544
        %v546 = vsel %vm473, %v433, 0.0
        %547 = vadd.xlane.f32.xlu0 %v546
        %v548 = vpop.xlane.xlu0 %547
        %v549 = vsel %vm473, %v434, 0.0
        %550 = vadd.xlane.f32.xlu0 %v549
        %v551 = vpop.xlane.xlu0 %550
        %v552 = vsel %vm473, %v435, 0.0
        %553 = vadd.xlane.f32.xlu0 %v552
        %v554 = vpop.xlane.xlu0 %553
        %v555 = vsel %vm473, %v436, 0.0
        %556 = vadd.xlane.f32.xlu0 %v555
        %v557 = vpop.xlane.xlu0 %556
        %v558 = vsel %vm473, %v437, 0.0
        %559 = vadd.xlane.f32.xlu0 %v558
        %v560 = vpop.xlane.xlu0 %559
        %v561 = vsel %vm473, %v438, 0.0
        %562 = vadd.xlane.f32.xlu0 %v561
        %v563 = vpop.xlane.xlu0 %562
        %v564 = vsel %vm473, %v439, 0.0
        %565 = vadd.xlane.f32.xlu0 %v564
        %v566 = vpop.xlane.xlu0 %565
        %v567 = vsel %vm473, %v440, 0.0
        %568 = vadd.xlane.f32.xlu0 %v567
        %v569 = vpop.xlane.xlu0 %568
        %v570 = vsel %vm473, %v441, 0.0
        %571 = vadd.xlane.f32.xlu0 %v570
        %v572 = vpop.xlane.xlu0 %571
        %v573 = vsel %vm473, %v442, 0.0
        %574 = vadd.xlane.f32.xlu0 %v573
        %v575 = vpop.xlane.xlu0 %574
        %v576 = vsel %vm473, %v443, 0.0
        %577 = vadd.xlane.f32.xlu0 %v576
        %v578 = vpop.xlane.xlu0 %577
        %v579 = vsel %vm473, %v444, 0.0
        %580 = vadd.xlane.f32.xlu0 %v579
        %v581 = vpop.xlane.xlu0 %580
        %v582 = vsel %vm473, %v445, 0.0
        %583 = vadd.xlane.f32.xlu0 %v582
        %v584 = vpop.xlane.xlu0 %583
        %v585 = vsel %vm473, %v446, 0.0
        %586 = vadd.xlane.f32.xlu0 %v585
        %v587 = vpop.xlane.xlu0 %586
        %v588 = vsel %vm473, %v447, 0.0
        %589 = vadd.xlane.f32.xlu0 %v588
        %v590 = vpop.xlane.xlu0 %589
        %v591 = vsel %vm473, %v448, 0.0
        %592 = vadd.xlane.f32.xlu0 %v591
        %v593 = vpop.xlane.xlu0 %592
        %v594 = vsel %vm473, %v449, 0.0
        %595 = vadd.xlane.f32.xlu0 %v594
        %v596 = vpop.xlane.xlu0 %595
        %v597 = vsel %vm473, %v450, 0.0
        %598 = vadd.xlane.f32.xlu0 %v597
        %v599 = vpop.xlane.xlu0 %598
        %v600 = vsel %vm473, %v451, 0.0
        %601 = vadd.xlane.f32.xlu0 %v600
        %v602 = vpop.xlane.xlu0 %601
        %v603 = vsel %vm473, %v452, 0.0
        %604 = vadd.xlane.f32.xlu0 %v603
        %v605 = vpop.xlane.xlu0 %604
        %v606 = vsel %vm473, %v453, 0.0
        %607 = vadd.xlane.f32.xlu0 %v606
        %v608 = vpop.xlane.xlu0 %607
        %v609 = vsel %vm473, %v454, 0.0
        %610 = vadd.xlane.f32.xlu0 %v609
        %v611 = vpop.xlane.xlu0 %610
        %v612 = vsel %vm473, %v455, 0.0
        %613 = vadd.xlane.f32.xlu0 %v612
        %v614 = vpop.xlane.xlu0 %613
        %v615 = vsel %vm473, %v456, 0.0
        %616 = vadd.xlane.f32.xlu0 %v615
        %v617 = vpop.xlane.xlu0 %616
        %v618 = vsel %vm473, %v457, 0.0
        %619 = vadd.xlane.f32.xlu0 %v618
        %v620 = vpop.xlane.xlu0 %619
        %v621 = vsel %vm473, %v458, 0.0
        %622 = vadd.xlane.f32.xlu0 %v621
        %v623 = vpop.xlane.xlu0 %622
        %v624 = vsel %vm473, %v459, 0.0
        %625 = vadd.xlane.f32.xlu0 %v624
        %v626 = vpop.xlane.xlu0 %625
        %v627 = vsel %vm473, %v460, 0.0
        %628 = vadd.xlane.f32.xlu0 %v627
        %v629 = vpop.xlane.xlu0 %628
        %v630 = vsel %vm473, %v461, 0.0
        %631 = vadd.xlane.f32.xlu0 %v630
        %v632 = vpop.xlane.xlu0 %631
        %v633 = vsel %vm473, %v462, 0.0
        %634 = vadd.xlane.f32.xlu0 %v633
        %v635 = vpop.xlane.xlu0 %634
        %v636 = vsel %vm473, %v463, 0.0
        %637 = vadd.xlane.f32.xlu0 %v636
        %v638 = vpop.xlane.xlu0 %637
        %v639 = vsel %vm473, %v464, 0.0
        %640 = vadd.xlane.f32.xlu0 %v639
        %v641 = vpop.xlane.xlu0 %640
        %v642 = vsel %vm473, %v465, 0.0
        %643 = vadd.xlane.f32.xlu0 %v642
        %v644 = vpop.xlane.xlu0 %643
        %v645 = vsel %vm473, %v466, 0.0
        %646 = vadd.xlane.f32.xlu0 %v645
        %v647 = vpop.xlane.xlu0 %646
        %v648 = vsel %vm473, %v467, 0.0
        %649 = vadd.xlane.f32.xlu0 %v648
        %v650 = vpop.xlane.xlu0 %649
        %v651 = vsel %vm473, %v468, 0.0
        %652 = vadd.xlane.f32.xlu0 %v651
        %v653 = vpop.xlane.xlu0 %652
        %v654 = vsel %vm473, %v469, 0.0
        %655 = vadd.xlane.f32.xlu0 %v654
        %v656 = vpop.xlane.xlu0 %655
        %v657 = vsel %vm473, %v470, 0.0
        %658 = vadd.xlane.f32.xlu0 %v657
        %v659 = vpop.xlane.xlu0 %658
        %v660 = vsel %vm473, %v471, 0.0
        %661 = vadd.xlane.f32.xlu0 %v660
        %v662 = vpop.xlane.xlu0 %661
        %v663 = vsel %vm473, %v472, 0.0
        %664 = vadd.xlane.f32.xlu0 %v663
        %v665 = vpop.xlane.xlu0 %664
        %698 = vrot.lane.b32.xlu0 %v409, 64
        %v699 = vpop.permute.xlu0 %698
        %700 = vrot.lane.b32.xlu0 %v410, 64
        %v701 = vpop.permute.xlu0 %700
        %702 = vrot.lane.b32.xlu0 %v411, 64
        %v703 = vpop.permute.xlu0 %702
        %704 = vrot.lane.b32.xlu0 %v412, 64
        %v705 = vpop.permute.xlu0 %704
        %706 = vrot.lane.b32.xlu0 %v413, 64
        %v707 = vpop.permute.xlu0 %706
        %708 = vrot.lane.b32.xlu0 %v414, 64
        %v709 = vpop.permute.xlu0 %708
        %710 = vrot.lane.b32.xlu0 %v415, 64
        %v711 = vpop.permute.xlu0 %710
        %712 = vrot.lane.b32.xlu0 %v416, 64
        %v713 = vpop.permute.xlu0 %712
        %714 = vrot.lane.b32.xlu0 %v417, 64
        %v715 = vpop.permute.xlu0 %714
        %716 = vrot.lane.b32.xlu0 %v418, 64
        %v717 = vpop.permute.xlu0 %716
        %718 = vrot.lane.b32.xlu0 %v419, 64
        %v719 = vpop.permute.xlu0 %718
        %720 = vrot.lane.b32.xlu0 %v420, 64
        %v721 = vpop.permute.xlu0 %720
        %722 = vrot.lane.b32.xlu0 %v421, 64
        %v723 = vpop.permute.xlu0 %722
        %724 = vrot.lane.b32.xlu0 %v422, 64
        %v725 = vpop.permute.xlu0 %724
        %726 = vrot.lane.b32.xlu0 %v423, 64
        %v727 = vpop.permute.xlu0 %726
        %728 = vrot.lane.b32.xlu0 %v424, 64
        %v729 = vpop.permute.xlu0 %728
        %730 = vrot.lane.b32.xlu0 %v425, 64
        %v731 = vpop.permute.xlu0 %730
        %732 = vrot.lane.b32.xlu0 %v426, 64
        %v733 = vpop.permute.xlu0 %732
        %734 = vrot.lane.b32.xlu0 %v427, 64
        %v735 = vpop.permute.xlu0 %734
        %736 = vrot.lane.b32.xlu0 %v428, 64
        %v737 = vpop.permute.xlu0 %736
        %738 = vrot.lane.b32.xlu0 %v429, 64
        %v739 = vpop.permute.xlu0 %738
        %740 = vrot.lane.b32.xlu0 %v430, 64
        %v741 = vpop.permute.xlu0 %740
        %742 = vrot.lane.b32.xlu0 %v431, 64
        %v743 = vpop.permute.xlu0 %742
        %744 = vrot.lane.b32.xlu0 %v432, 64
        %v745 = vpop.permute.xlu0 %744
        %746 = vrot.lane.b32.xlu0 %v433, 64
        %v747 = vpop.permute.xlu0 %746
        %748 = vrot.lane.b32.xlu0 %v434, 64
        %v749 = vpop.permute.xlu0 %748
        %750 = vrot.lane.b32.xlu0 %v435, 64
        %v751 = vpop.permute.xlu0 %750
        %752 = vrot.lane.b32.xlu0 %v436, 64
        %v753 = vpop.permute.xlu0 %752
        %754 = vrot.lane.b32.xlu0 %v437, 64
        %v755 = vpop.permute.xlu0 %754
        %756 = vrot.lane.b32.xlu0 %v438, 64
        %v757 = vpop.permute.xlu0 %756
        %758 = vrot.lane.b32.xlu0 %v439, 64
        %v759 = vpop.permute.xlu0 %758
        %760 = vrot.lane.b32.xlu0 %v440, 64
        %v761 = vpop.permute.xlu0 %760
        %v794 = vsel %vm473, %v699, 0.0
        %795 = vadd.xlane.f32.xlu0 %v794
        %v796 = vpop.xlane.xlu0 %795
        %v797 = vsel %vm473, %v701, 0.0
        %798 = vadd.xlane.f32.xlu0 %v797
        %v799 = vpop.xlane.xlu0 %798
        %v800 = vsel %vm473, %v703, 0.0
        %801 = vadd.xlane.f32.xlu0 %v800
        %v802 = vpop.xlane.xlu0 %801
        %v803 = vsel %vm473, %v705, 0.0
        %804 = vadd.xlane.f32.xlu0 %v803
        %v805 = vpop.xlane.xlu0 %804
        %v806 = vsel %vm473, %v707, 0.0
        %807 = vadd.xlane.f32.xlu0 %v806
        %v808 = vpop.xlane.xlu0 %807
        %v809 = vsel %vm473, %v709, 0.0
        %810 = vadd.xlane.f32.xlu0 %v809
        %v811 = vpop.xlane.xlu0 %810
        %v812 = vsel %vm473, %v711, 0.0
        %813 = vadd.xlane.f32.xlu0 %v812
        %v814 = vpop.xlane.xlu0 %813
        %v815 = vsel %vm473, %v713, 0.0
        %816 = vadd.xlane.f32.xlu0 %v815
        %v817 = vpop.xlane.xlu0 %816
        %v818 = vsel %vm473, %v715, 0.0
        %819 = vadd.xlane.f32.xlu0 %v818
        %v820 = vpop.xlane.xlu0 %819
        %v821 = vsel %vm473, %v717, 0.0
        %822 = vadd.xlane.f32.xlu0 %v821
        %v823 = vpop.xlane.xlu0 %822
        %v824 = vsel %vm473, %v719, 0.0
        %825 = vadd.xlane.f32.xlu0 %v824
        %v826 = vpop.xlane.xlu0 %825
        %v827 = vsel %vm473, %v721, 0.0
        %828 = vadd.xlane.f32.xlu0 %v827
        %v829 = vpop.xlane.xlu0 %828
        %v830 = vsel %vm473, %v723, 0.0
        %831 = vadd.xlane.f32.xlu0 %v830
        %v832 = vpop.xlane.xlu0 %831
        %v833 = vsel %vm473, %v725, 0.0
        %834 = vadd.xlane.f32.xlu0 %v833
        %v835 = vpop.xlane.xlu0 %834
        %v836 = vsel %vm473, %v727, 0.0
        %837 = vadd.xlane.f32.xlu0 %v836
        %v838 = vpop.xlane.xlu0 %837
        %v839 = vsel %vm473, %v729, 0.0
        %840 = vadd.xlane.f32.xlu0 %v839
        %v841 = vpop.xlane.xlu0 %840
        %v842 = vsel %vm473, %v731, 0.0
        %843 = vadd.xlane.f32.xlu0 %v842
        %v844 = vpop.xlane.xlu0 %843
        %v845 = vsel %vm473, %v733, 0.0
        %846 = vadd.xlane.f32.xlu0 %v845
        %v847 = vpop.xlane.xlu0 %846
        %v848 = vsel %vm473, %v735, 0.0
        %849 = vadd.xlane.f32.xlu0 %v848
        %v850 = vpop.xlane.xlu0 %849
        %v851 = vsel %vm473, %v737, 0.0
        %852 = vadd.xlane.f32.xlu0 %v851
        %v853 = vpop.xlane.xlu0 %852
        %v854 = vsel %vm473, %v739, 0.0
        %855 = vadd.xlane.f32.xlu0 %v854
        %v856 = vpop.xlane.xlu0 %855
        %v857 = vsel %vm473, %v741, 0.0
        %858 = vadd.xlane.f32.xlu0 %v857
        %v859 = vpop.xlane.xlu0 %858
        %v860 = vsel %vm473, %v743, 0.0
        %861 = vadd.xlane.f32.xlu0 %v860
        %v862 = vpop.xlane.xlu0 %861
        %v863 = vsel %vm473, %v745, 0.0
        %864 = vadd.xlane.f32.xlu0 %v863
        %v865 = vpop.xlane.xlu0 %864
        %v866 = vsel %vm473, %v747, 0.0
        %867 = vadd.xlane.f32.xlu0 %v866
        %v868 = vpop.xlane.xlu0 %867
        %v869 = vsel %vm473, %v749, 0.0
        %870 = vadd.xlane.f32.xlu0 %v869
        %v871 = vpop.xlane.xlu0 %870
        %v872 = vsel %vm473, %v751, 0.0
        %873 = vadd.xlane.f32.xlu0 %v872
        %v874 = vpop.xlane.xlu0 %873
        %v875 = vsel %vm473, %v753, 0.0
        %876 = vadd.xlane.f32.xlu0 %v875
        %v877 = vpop.xlane.xlu0 %876
        %v878 = vsel %vm473, %v755, 0.0
        %879 = vadd.xlane.f32.xlu0 %v878
        %v880 = vpop.xlane.xlu0 %879
        %v881 = vsel %vm473, %v757, 0.0
        %882 = vadd.xlane.f32.xlu0 %v881
        %v883 = vpop.xlane.xlu0 %882
        %v884 = vsel %vm473, %v759, 0.0
        %885 = vadd.xlane.f32.xlu0 %v884
        %v886 = vpop.xlane.xlu0 %885
        %v887 = vsel %vm473, %v761, 0.0
        %888 = vadd.xlane.f32.xlu0 %v887
        %v889 = vpop.xlane.xlu0 %888
        %922 = vrot.lane.b32.xlu0 %v441, 64
        %v923 = vpop.permute.xlu0 %922
        %924 = vrot.lane.b32.xlu0 %v442, 64
        %v925 = vpop.permute.xlu0 %924
        %926 = vrot.lane.b32.xlu0 %v443, 64
        %v927 = vpop.permute.xlu0 %926
        %928 = vrot.lane.b32.xlu0 %v444, 64
        %v929 = vpop.permute.xlu0 %928
        %930 = vrot.lane.b32.xlu0 %v445, 64
        %v931 = vpop.permute.xlu0 %930
        %932 = vrot.lane.b32.xlu0 %v446, 64
        %v933 = vpop.permute.xlu0 %932
        %934 = vrot.lane.b32.xlu0 %v447, 64
        %v935 = vpop.permute.xlu0 %934
        %936 = vrot.lane.b32.xlu0 %v448, 64
        %v937 = vpop.permute.xlu0 %936
        %938 = vrot.lane.b32.xlu0 %v449, 64
        %v939 = vpop.permute.xlu0 %938
        %940 = vrot.lane.b32.xlu0 %v450, 64
        %v941 = vpop.permute.xlu0 %940
        %942 = vrot.lane.b32.xlu0 %v451, 64
        %v943 = vpop.permute.xlu0 %942
        %944 = vrot.lane.b32.xlu0 %v452, 64
        %v945 = vpop.permute.xlu0 %944
        %946 = vrot.lane.b32.xlu0 %v453, 64
        %v947 = vpop.permute.xlu0 %946
        %948 = vrot.lane.b32.xlu0 %v454, 64
        %v949 = vpop.permute.xlu0 %948
        %950 = vrot.lane.b32.xlu0 %v455, 64
        %v951 = vpop.permute.xlu0 %950
        %952 = vrot.lane.b32.xlu0 %v456, 64
        %v953 = vpop.permute.xlu0 %952
        %954 = vrot.lane.b32.xlu0 %v457, 64
        %v955 = vpop.permute.xlu0 %954
        %956 = vrot.lane.b32.xlu0 %v458, 64
        %v957 = vpop.permute.xlu0 %956
        %958 = vrot.lane.b32.xlu0 %v459, 64
        %v959 = vpop.permute.xlu0 %958
        %960 = vrot.lane.b32.xlu0 %v460, 64
        %v961 = vpop.permute.xlu0 %960
        %962 = vrot.lane.b32.xlu0 %v461, 64
        %v963 = vpop.permute.xlu0 %962
        %964 = vrot.lane.b32.xlu0 %v462, 64
        %v965 = vpop.permute.xlu0 %964
        %966 = vrot.lane.b32.xlu0 %v463, 64
        %v967 = vpop.permute.xlu0 %966
        %968 = vrot.lane.b32.xlu0 %v464, 64
        %v969 = vpop.permute.xlu0 %968
        %970 = vrot.lane.b32.xlu0 %v465, 64
        %v971 = vpop.permute.xlu0 %970
        %972 = vrot.lane.b32.xlu0 %v466, 64
        %v973 = vpop.permute.xlu0 %972
        %974 = vrot.lane.b32.xlu0 %v467, 64
        %v975 = vpop.permute.xlu0 %974
        %976 = vrot.lane.b32.xlu0 %v468, 64
        %v977 = vpop.permute.xlu0 %976
        %978 = vrot.lane.b32.xlu0 %v469, 64
        %v979 = vpop.permute.xlu0 %978
        %980 = vrot.lane.b32.xlu0 %v470, 64
        %v981 = vpop.permute.xlu0 %980
        %982 = vrot.lane.b32.xlu0 %v471, 64
        %v983 = vpop.permute.xlu0 %982
        %984 = vrot.lane.b32.xlu0 %v472, 64
        %v985 = vpop.permute.xlu0 %984
        %v1018 = vsel %vm473, %v923, 0.0
        %1019 = vadd.xlane.f32.xlu0 %v1018
        %v1020 = vpop.xlane.xlu0 %1019
        %v1021 = vsel %vm473, %v925, 0.0
        %1022 = vadd.xlane.f32.xlu0 %v1021
        %v1023 = vpop.xlane.xlu0 %1022
        %v1024 = vsel %vm473, %v927, 0.0
        %1025 = vadd.xlane.f32.xlu0 %v1024
        %v1026 = vpop.xlane.xlu0 %1025
        %v1027 = vsel %vm473, %v929, 0.0
        %1028 = vadd.xlane.f32.xlu0 %v1027
        %v1029 = vpop.xlane.xlu0 %1028
        %v1030 = vsel %vm473, %v931, 0.0
        %1031 = vadd.xlane.f32.xlu0 %v1030
        %v1032 = vpop.xlane.xlu0 %1031
        %v1033 = vsel %vm473, %v933, 0.0
        %1034 = vadd.xlane.f32.xlu0 %v1033
        %v1035 = vpop.xlane.xlu0 %1034
        %v1036 = vsel %vm473, %v935, 0.0
        %1037 = vadd.xlane.f32.xlu0 %v1036
        %v1038 = vpop.xlane.xlu0 %1037
        %v1039 = vsel %vm473, %v937, 0.0
        %1040 = vadd.xlane.f32.xlu0 %v1039
        %v1041 = vpop.xlane.xlu0 %1040
        %v1042 = vsel %vm473, %v939, 0.0
        %1043 = vadd.xlane.f32.xlu0 %v1042
        %v1044 = vpop.xlane.xlu0 %1043
        %v1045 = vsel %vm473, %v941, 0.0
        %1046 = vadd.xlane.f32.xlu0 %v1045
        %v1047 = vpop.xlane.xlu0 %1046
        %v1048 = vsel %vm473, %v943, 0.0
        %1049 = vadd.xlane.f32.xlu0 %v1048
        %v1050 = vpop.xlane.xlu0 %1049
        %v1051 = vsel %vm473, %v945, 0.0
        %1052 = vadd.xlane.f32.xlu0 %v1051
        %v1053 = vpop.xlane.xlu0 %1052
        %v1054 = vsel %vm473, %v947, 0.0
        %1055 = vadd.xlane.f32.xlu0 %v1054
        %v1056 = vpop.xlane.xlu0 %1055
        %v1057 = vsel %vm473, %v949, 0.0
        %1058 = vadd.xlane.f32.xlu0 %v1057
        %v1059 = vpop.xlane.xlu0 %1058
        %v1060 = vsel %vm473, %v951, 0.0
        %1061 = vadd.xlane.f32.xlu0 %v1060
        %v1062 = vpop.xlane.xlu0 %1061
        %v1063 = vsel %vm473, %v953, 0.0
        %1064 = vadd.xlane.f32.xlu0 %v1063
        %v1065 = vpop.xlane.xlu0 %1064
        %v1066 = vsel %vm473, %v955, 0.0
        %1067 = vadd.xlane.f32.xlu0 %v1066
        %v1068 = vpop.xlane.xlu0 %1067
        %v1069 = vsel %vm473, %v957, 0.0
        %1070 = vadd.xlane.f32.xlu0 %v1069
        %v1071 = vpop.xlane.xlu0 %1070
        %v1072 = vsel %vm473, %v959, 0.0
        %1073 = vadd.xlane.f32.xlu0 %v1072
        %v1074 = vpop.xlane.xlu0 %1073
        %v1075 = vsel %vm473, %v961, 0.0
        %1076 = vadd.xlane.f32.xlu0 %v1075
        %v1077 = vpop.xlane.xlu0 %1076
        %v1078 = vsel %vm473, %v963, 0.0
        %1079 = vadd.xlane.f32.xlu0 %v1078
        %v1080 = vpop.xlane.xlu0 %1079
        %v1081 = vsel %vm473, %v965, 0.0
        %1082 = vadd.xlane.f32.xlu0 %v1081
        %v1083 = vpop.xlane.xlu0 %1082
        %v1084 = vsel %vm473, %v967, 0.0
        %1085 = vadd.xlane.f32.xlu0 %v1084
        %v1086 = vpop.xlane.xlu0 %1085
        %v1087 = vsel %vm473, %v969, 0.0
        %1088 = vadd.xlane.f32.xlu0 %v1087
        %v1089 = vpop.xlane.xlu0 %1088
        %v1090 = vsel %vm473, %v971, 0.0
        %1091 = vadd.xlane.f32.xlu0 %v1090
        %v1092 = vpop.xlane.xlu0 %1091
        %v1093 = vsel %vm473, %v973, 0.0
        %1094 = vadd.xlane.f32.xlu0 %v1093
        %v1095 = vpop.xlane.xlu0 %1094
        %v1096 = vsel %vm473, %v975, 0.0
        %1097 = vadd.xlane.f32.xlu0 %v1096
        %v1098 = vpop.xlane.xlu0 %1097
        %v1099 = vsel %vm473, %v977, 0.0
        %1100 = vadd.xlane.f32.xlu0 %v1099
        %v1101 = vpop.xlane.xlu0 %1100
        %v1102 = vsel %vm473, %v979, 0.0
        %1103 = vadd.xlane.f32.xlu0 %v1102
        %v1104 = vpop.xlane.xlu0 %1103
        %v1105 = vsel %vm473, %v981, 0.0
        %1106 = vadd.xlane.f32.xlu0 %v1105
        %v1107 = vpop.xlane.xlu0 %1106
        %v1108 = vsel %vm473, %v983, 0.0
        %1109 = vadd.xlane.f32.xlu0 %v1108
        %v1110 = vpop.xlane.xlu0 %1109
        %v1111 = vsel %vm473, %v985, 0.0
        %1112 = vadd.xlane.f32.xlu0 %v1111
        %v1113 = vpop.xlane.xlu0 %1112
        %vm1114 = vcmask 7168
        %v1115 = vsel %vm1114, %v476, %v796
        %v1116 = vsel %vm1114, %v479, %v799
        %v1117 = vsel %vm1114, %v482, %v802
        %v1118 = vsel %vm1114, %v485, %v805
        %v1119 = vsel %vm1114, %v488, %v808
        %v1120 = vsel %vm1114, %v491, %v811
        %v1121 = vsel %vm1114, %v494, %v814
        %v1122 = vsel %vm1114, %v497, %v817
        %v1123 = vsel %vm1114, %v500, %v820
        %v1124 = vsel %vm1114, %v503, %v823
        %v1125 = vsel %vm1114, %v506, %v826
        %v1126 = vsel %vm1114, %v509, %v829
        %v1127 = vsel %vm1114, %v512, %v832
        %v1128 = vsel %vm1114, %v515, %v835
        %v1129 = vsel %vm1114, %v518, %v838
        %v1130 = vsel %vm1114, %v521, %v841
        %v1131 = vsel %vm1114, %v524, %v844
        %v1132 = vsel %vm1114, %v527, %v847
        %v1133 = vsel %vm1114, %v530, %v850
        %v1134 = vsel %vm1114, %v533, %v853
        %v1135 = vsel %vm1114, %v536, %v856
        %v1136 = vsel %vm1114, %v539, %v859
        %v1137 = vsel %vm1114, %v542, %v862
        %v1138 = vsel %vm1114, %v545, %v865
        %v1139 = vsel %vm1114, %v548, %v868
        %v1140 = vsel %vm1114, %v551, %v871
        %v1141 = vsel %vm1114, %v554, %v874
        %v1142 = vsel %vm1114, %v557, %v877
        %v1143 = vsel %vm1114, %v560, %v880
        %v1144 = vsel %vm1114, %v563, %v883
        %v1145 = vsel %vm1114, %v566, %v886
        %v1146 = vsel %vm1114, %v569, %v889
        %v1147 = vsel %vm1114, %v572, %v1020
        %v1148 = vsel %vm1114, %v575, %v1023
        %v1149 = vsel %vm1114, %v578, %v1026
        %v1150 = vsel %vm1114, %v581, %v1029
        %v1151 = vsel %vm1114, %v584, %v1032
        %v1152 = vsel %vm1114, %v587, %v1035
        %v1153 = vsel %vm1114, %v590, %v1038
        %v1154 = vsel %vm1114, %v593, %v1041
        %v1155 = vsel %vm1114, %v596, %v1044
        %v1156 = vsel %vm1114, %v599, %v1047
        %v1157 = vsel %vm1114, %v602, %v1050
        %v1158 = vsel %vm1114, %v605, %v1053
        %v1159 = vsel %vm1114, %v608, %v1056
        %v1160 = vsel %vm1114, %v611, %v1059
        %v1161 = vsel %vm1114, %v614, %v1062
        %v1162 = vsel %vm1114, %v617, %v1065
        %v1163 = vsel %vm1114, %v620, %v1068
        %v1164 = vsel %vm1114, %v623, %v1071
        %v1165 = vsel %vm1114, %v626, %v1074
        %v1166 = vsel %vm1114, %v629, %v1077
        %v1167 = vsel %vm1114, %v632, %v1080
        %v1168 = vsel %vm1114, %v635, %v1083
        %v1169 = vsel %vm1114, %v638, %v1086
        %v1170 = vsel %vm1114, %v641, %v1089
        %v1171 = vsel %vm1114, %v644, %v1092
        %v1172 = vsel %vm1114, %v647, %v1095
        %v1173 = vsel %vm1114, %v650, %v1098
        %v1174 = vsel %vm1114, %v653, %v1101
        %v1175 = vsel %vm1114, %v656, %v1104
        %v1176 = vsel %vm1114, %v659, %v1107
        %v1177 = vsel %vm1114, %v662, %v1110
        %v1178 = vsel %vm1114, %v665, %v1113
        %vm1179 = vcmask 15360
        %1180 = vst.msk [vmem:[%s305] sm:$0xff] %vm1179, %v1115
        %1181 = vst.msk [vmem:[%s305 + $0x8] sm:$0xff] %vm1179, %v1116
        %1182 = vst.msk [vmem:[%s305 + $0x10] sm:$0xff] %vm1179, %v1117
        %1183 = vst.msk [vmem:[%s305 + $0x18] sm:$0xff] %vm1179, %v1118
        %1184 = vst.msk [vmem:[%s305 + $0x20] sm:$0xff] %vm1179, %v1119
        %1185 = vst.msk [vmem:[%s305 + $0x28] sm:$0xff] %vm1179, %v1120
        %1186 = vst.msk [vmem:[%s305 + $0x30] sm:$0xff] %vm1179, %v1121
        %1187 = vst.msk [vmem:[%s305 + $0x38] sm:$0xff] %vm1179, %v1122
        %1188 = vst.msk [vmem:[%s305 + $0x40] sm:$0xff] %vm1179, %v1123
        %1189 = vst.msk [vmem:[%s305 + $0x48] sm:$0xff] %vm1179, %v1124
        %1190 = vst.msk [vmem:[%s305 + $0x50] sm:$0xff] %vm1179, %v1125
        %1191 = vst.msk [vmem:[%s305 + $0x58] sm:$0xff] %vm1179, %v1126
        %1192 = vst.msk [vmem:[%s305 + $0x60] sm:$0xff] %vm1179, %v1127
        %1193 = vst.msk [vmem:[%s305 + $0x68] sm:$0xff] %vm1179, %v1128
        %1194 = vst.msk [vmem:[%s305 + $0x70] sm:$0xff] %vm1179, %v1129
        %1195 = vst.msk [vmem:[%s305 + $0x78] sm:$0xff] %vm1179, %v1130
        %1196 = vst.msk [vmem:[%s305 + $0x80] sm:$0xff] %vm1179, %v1131
        %1197 = vst.msk [vmem:[%s305 + $0x88] sm:$0xff] %vm1179, %v1132
        %1198 = vst.msk [vmem:[%s305 + $0x90] sm:$0xff] %vm1179, %v1133
        %1199 = vst.msk [vmem:[%s305 + $0x98] sm:$0xff] %vm1179, %v1134
        %1200 = vst.msk [vmem:[%s305 + $0xa0] sm:$0xff] %vm1179, %v1135
        %1201 = vst.msk [vmem:[%s305 + $0xa8] sm:$0xff] %vm1179, %v1136
        %1202 = vst.msk [vmem:[%s305 + $0xb0] sm:$0xff] %vm1179, %v1137
        %1203 = vst.msk [vmem:[%s305 + $0xb8] sm:$0xff] %vm1179, %v1138
        %1204 = vst.msk [vmem:[%s305 + $0xc0] sm:$0xff] %vm1179, %v1139
        %1205 = vst.msk [vmem:[%s305 + $0xc8] sm:$0xff] %vm1179, %v1140
        %1206 = vst.msk [vmem:[%s305 + $0xd0] sm:$0xff] %vm1179, %v1141
        %1207 = vst.msk [vmem:[%s305 + $0xd8] sm:$0xff] %vm1179, %v1142
        %1208 = vst.msk [vmem:[%s305 + $0xe0] sm:$0xff] %vm1179, %v1143
        %1209 = vst.msk [vmem:[%s305 + $0xe8] sm:$0xff] %vm1179, %v1144
        %1210 = vst.msk [vmem:[%s305 + $0xf0] sm:$0xff] %vm1179, %v1145
        %1211 = vst.msk [vmem:[%s305 + $0xf8] sm:$0xff] %vm1179, %v1146
        %1212 = vst.msk [vmem:[%s311] sm:$0xff] %vm1179, %v1147
        %1213 = vst.msk [vmem:[%s311 + $0x8] sm:$0xff] %vm1179, %v1148
        %1214 = vst.msk [vmem:[%s311 + $0x10] sm:$0xff] %vm1179, %v1149
        %1215 = vst.msk [vmem:[%s311 + $0x18] sm:$0xff] %vm1179, %v1150
        %1216 = vst.msk [vmem:[%s311 + $0x20] sm:$0xff] %vm1179, %v1151
        %1217 = vst.msk [vmem:[%s311 + $0x28] sm:$0xff] %vm1179, %v1152
        %1218 = vst.msk [vmem:[%s311 + $0x30] sm:$0xff] %vm1179, %v1153
        %1219 = vst.msk [vmem:[%s311 + $0x38] sm:$0xff] %vm1179, %v1154
        %1220 = vst.msk [vmem:[%s311 + $0x40] sm:$0xff] %vm1179, %v1155
        %1221 = vst.msk [vmem:[%s311 + $0x48] sm:$0xff] %vm1179, %v1156
        %1222 = vst.msk [vmem:[%s311 + $0x50] sm:$0xff] %vm1179, %v1157
        %1223 = vst.msk [vmem:[%s311 + $0x58] sm:$0xff] %vm1179, %v1158
        %1224 = vst.msk [vmem:[%s311 + $0x60] sm:$0xff] %vm1179, %v1159
        %1225 = vst.msk [vmem:[%s311 + $0x68] sm:$0xff] %vm1179, %v1160
        %1226 = vst.msk [vmem:[%s311 + $0x70] sm:$0xff] %vm1179, %v1161
        %1227 = vst.msk [vmem:[%s311 + $0x78] sm:$0xff] %vm1179, %v1162
        %1228 = vst.msk [vmem:[%s311 + $0x80] sm:$0xff] %vm1179, %v1163
        %1229 = vst.msk [vmem:[%s311 + $0x88] sm:$0xff] %vm1179, %v1164
        %1230 = vst.msk [vmem:[%s311 + $0x90] sm:$0xff] %vm1179, %v1165
        %1231 = vst.msk [vmem:[%s311 + $0x98] sm:$0xff] %vm1179, %v1166
        %1232 = vst.msk [vmem:[%s311 + $0xa0] sm:$0xff] %vm1179, %v1167
        %1233 = vst.msk [vmem:[%s311 + $0xa8] sm:$0xff] %vm1179, %v1168
        %1234 = vst.msk [vmem:[%s311 + $0xb0] sm:$0xff] %vm1179, %v1169
        %1235 = vst.msk [vmem:[%s311 + $0xb8] sm:$0xff] %vm1179, %v1170
        %1236 = vst.msk [vmem:[%s311 + $0xc0] sm:$0xff] %vm1179, %v1171
        %1237 = vst.msk [vmem:[%s311 + $0xc8] sm:$0xff] %vm1179, %v1172
        %1238 = vst.msk [vmem:[%s311 + $0xd0] sm:$0xff] %vm1179, %v1173
        %1239 = vst.msk [vmem:[%s311 + $0xd8] sm:$0xff] %vm1179, %v1174
        %1240 = vst.msk [vmem:[%s311 + $0xe0] sm:$0xff] %vm1179, %v1175
        %1241 = vst.msk [vmem:[%s311 + $0xe8] sm:$0xff] %vm1179, %v1176
        %1242 = vst.msk [vmem:[%s311 + $0xf0] sm:$0xff] %vm1179, %v1177
        %1243 = vst.msk [vmem:[%s311 + $0xf8] sm:$0xff] %vm1179, %v1178
        %s1244 = smul.u32 32, %s22
        %p1245 = scmp.lt.s32.totalorder %s1244, 63
        %s1246 = scalar_select %p1245, %s1244, 63
        %s1247 = smul.addr %s1246, 8
        %s1248 = scalar_lea.vmem %s3, %s1247
        %s1249 = smul.u32 32, %s22
        %p1250 = scmp.lt.s32.totalorder %s1249, 63
        %s1251 = scalar_select %p1250, %s1249, 63
        %s1252 = smul.addr %s1251, 8
        %s1253 = scalar_lea.vmem %s4, %s1252
        // Predicated region
        $region45: #{tpu_custom_call.1} parent=31 // pred_check
          %p1254 = pneg %p118
        $region46: #{tpu_custom_call.1} parent=31 // pred_check_branch
          %1256 = sbr.rel (%p1254) target = $region48
        $region47: #{tpu_custom_call.1} parent=31 // pred_region
          %s1257 = smul.u32 32, %s22
        $region48: #{tpu_custom_call.1} parent=31 // pred_fallthru
          _
        // Predicated region
        $region49: #{tpu_custom_call.1} parent=31 // pred_check
          %p1258 = pneg %p144
        $region50: #{tpu_custom_call.1} parent=31 // pred_check_branch
          %1260 = sbr.rel (%p1258) target = $region52
        $region51: #{tpu_custom_call.1} parent=31 // pred_region
          %s1261 = smul.u32 32, %s22
        $region52: #{tpu_custom_call.1} parent=31 // pred_fallthru
          _
      $region32: #{tpu_custom_call.1} parent=5 // pred_fallthru
        _
      %p1262 = scmp.le.s32.totalorder 2, %s17
      // Predicated region
      $region53: #{tpu_custom_call.1} parent=5 // pred_check
        %p1263 = pneg %p1262
      $region54: #{tpu_custom_call.1} parent=5 // pred_check_branch
        %1265 = sbr.rel (%p1263) target = $region56
      $region55: #{tpu_custom_call.1} parent=5 // pred_region
        %s1266 = ssub.s32 %s17, 2
        // Predicated region
        $region57: #{tpu_custom_call.1} parent=55 // pred_check
          %p1267 = pneg %p124
        $region58: #{tpu_custom_call.1} parent=55 // pred_check_branch
          %1269 = sbr.rel (%p1267) target = $region60
        $region59: #{tpu_custom_call.1} parent=55 // pred_region
          %s1270 = smul.u32 32, %s23
          %p1271 = scmp.lt.s32.totalorder %s1270, 63
          %s1272 = scalar_select %p1271, %s1270, 63
          %s1273 = smul.addr %s1272, 8
          %s1274 = scalar_lea.vmem %s3, %s1273
        $region60: #{tpu_custom_call.1} parent=55 // pred_fallthru
          _
        // Predicated region
        $region61: #{tpu_custom_call.1} parent=55 // pred_check
          %p1275 = pneg %p150
        $region62: #{tpu_custom_call.1} parent=55 // pred_check_branch
          %1277 = sbr.rel (%p1275) target = $region64
        $region63: #{tpu_custom_call.1} parent=55 // pred_region
          %s1278 = smul.u32 32, %s23
          %p1279 = scmp.lt.s32.totalorder %s1278, 63
          %s1280 = scalar_select %p1279, %s1278, 63
          %s1281 = smul.addr %s1280, 8
          %s1282 = scalar_lea.vmem %s4, %s1281
        $region64: #{tpu_custom_call.1} parent=55 // pred_fallthru
          _
      $region56: #{tpu_custom_call.1} parent=5 // pred_fallthru
        _
    $region6: #{tpu_custom_call.1} parent=1 // loop_footer
      %s21 = sadd.s32 1, %s17
    $region7: #{tpu_custom_call.1} parent=1 // loop_footer_branch
      %16 = sbr.rel target = $region3
    $region8: #{tpu_custom_call.1} parent=1 // loop_exit
      _
    %1283 = vsyncpa [#allocation3], 1
    %s1284 = scalar_lea.sflag [#allocation3], 1
    %1285 = vsyncpa %s1284, 1
    %1286 = vsyncpa [#allocation5], 1
    %s1287 = scalar_lea.sflag [#allocation5], 1
    %1288 = vsyncpa %s1287, 1

</llo_original>
